<compile_context>
chip_gen: v7x
topology: tpu7x:2x2x1
jax: 0.10.0
libtpu: 0.0.40
codegen_flags: <defaults>
</compile_context>

<pallas_src>
import functools

import jax
import jax.numpy as jnp
from jax.experimental import pallas as pl
from jax.experimental.pallas import tpu as pltpu


def _round_up(v, m):
    return (v + m - 1) // m * m


def autopool_kernel(x_ref, alpha_ref, out_ref, sig_ref,
                    m_sc, den_sc, wsum_sc, *, seq_len, block_t, mask_t):
    # x_ref:   (bb, tt, F)  input tile
    # alpha:   (1, F)       learned per-feature temperature (shared)
    # out_ref: (bb, F)      pooled output, written on the last T-chunk only
    # sig_ref: (bb, tt, F)  sigmoid activations (the module's second output)
    # scratch: running max / softmax denominator / weighted numerator, (bb, F)
    j = pl.program_id(1)

    @pl.when(j == 0)
    def _init():
        m_sc[...] = jnp.full_like(m_sc, -jnp.inf)
        den_sc[...] = jnp.zeros_like(den_sc)
        wsum_sc[...] = jnp.zeros_like(wsum_sc)

    x = x_ref[...]                                   # (bb, tt, F) f32
    alpha = alpha_ref[...]                           # (1, F)      f32

    if mask_t:  # partial last T-chunk: neutralize out-of-range sequence rows
        t_idx = j * block_t + jax.lax.broadcasted_iota(jnp.int32, x.shape, 1)
        valid = t_idx < seq_len
        x = jnp.where(valid, x, 0.0)

    # sigmoid(x) = 0.5 * (tanh(x/2) + 1): a single EUP transcendental.
    sig = 0.5 * (jnp.tanh(0.5 * x) + 1.0)
    sig_ref[...] = sig

    a = sig * alpha[:, None, :]                      # broadcast over bb and tt
    if mask_t:
        a = jnp.where(valid, a, -jnp.inf)            # drop from max / exp-sums

    m_prev = m_sc[...]
    m_new = jnp.maximum(m_prev, jnp.max(a, axis=1))  # (bb, F)
    corr = jnp.exp(m_prev - m_new)                   # rescale previous sums
    p = jnp.exp(a - m_new[:, None, :])               # softmax numerator chunk
    den_sc[...] = corr * den_sc[...] + jnp.sum(p, axis=1)
    wsum_sc[...] = corr * wsum_sc[...] + jnp.sum(sig * p, axis=1)
    m_sc[...] = m_new

    @pl.when(j == pl.num_programs(1) - 1)
    def _finalize():
        # Divide only the reduced (bb, F) result.
        out_ref[...] = wsum_sc[...] / den_sc[...]


def autopool(x, alpha, *, block_b=None, block_t=None):
    B, T, F = x.shape
    SUB, LANE = 8, 128

    x = x.astype(jnp.float32)                        # no-op for f32 inputs
    alpha2d = alpha.astype(jnp.float32).reshape(1, F)

    # ---- generation-aware VMEM budget --------------------------------------
    try:
        phys_vmem = int(pltpu.get_tpu_info().vmem_capacity_bytes)
    except Exception:
        phys_vmem = 64 * 1024 * 1024                 # conservative (v7x per-TC)
    tile_budget = phys_vmem // 2                     # bytes allowed for tiles
    vmem_limit = (phys_vmem * 3) // 4

    f_lane = _round_up(F, LANE)                      # VMEM layout padding only

    def _row_bytes(tt):
        # f32 VMEM bytes per batch row per step: 2x double-buffered x input,
        # 2x double-buffered sig output, ~3 (tt, F) temporaries, + (1, F) terms
        # for scratch accumulators / pooled output, with (8,128) tile padding.
        return 7 * _round_up(tt, SUB) * f_lane * 4 + 8 * f_lane * 4

    # ---- sequence chunk: prefer whole-T tiles, fall back to T-chunking -----
    if block_t is not None:
        tt = min(_round_up(block_t, SUB), _round_up(T, SUB))
        tt = T if tt >= T else tt
    elif tile_budget // _row_bytes(T) >= SUB:
        tt = T
    else:
        # A whole-T tile cannot hold even 8 batch rows -> online softmax over
        # sequence chunks keeps VMEM bounded for arbitrarily large T.
        tt = (tile_budget // (SUB * 7 * f_lane * 4)) // SUB * SUB
        tt = max(SUB, min(tt, _round_up(T, SUB)))
        tt = T if tt >= T else tt
        # TODO(synk): add a parallel F-tile grid axis for huge F where even an
        # (8, 8, F) slab overflows VMEM.

    # ---- batch block --------------------------------------------------------
    if block_b is not None:
        bb = max(SUB, _round_up(block_b, SUB))
    else:
        bb = (tile_budget // _row_bytes(tt)) // SUB * SUB
        bb = max(SUB, min(bb, 512))
    bb = max(SUB, min(bb, _round_up(B, SUB)))

    # Megacore (v7x): if a single block would cover the whole batch, split it
    # so the second TensorCore gets work.  Partial blocks are masked, so this
    # adds no HBM traffic — only one extra ~0.35us grid step on 1-TC chips.
    if B >= 2 * SUB and bb >= _round_up(B, SUB):
        bb = _round_up(pl.cdiv(B, 2), SUB)

    nb = pl.cdiv(B, bb)
    nt = pl.cdiv(T, tt)
    mask_t = (T % tt) != 0

    kernel = functools.partial(autopool_kernel, seq_len=T, block_t=tt,
                               mask_t=mask_t)

    cost = pl.CostEstimate(
        flops=6 * B * T * F,
        transcendentals=2 * B * T * F,
        bytes_accessed=(2 * B * T * F + B * F + F) * 4,
    )

    final_out, sigmoid_output = pl.pallas_call(
        kernel,
        out_shape=(
            jax.ShapeDtypeStruct((B, F), jnp.float32),     # final_out
            jax.ShapeDtypeStruct((B, T, F), jnp.float32),  # sigmoid_output
        ),
        grid_spec=pltpu.PrefetchScalarGridSpec(
            num_scalar_prefetch=0,
            grid=(nb, nt),
            in_specs=[
                pl.BlockSpec((bb, tt, F), lambda i, j: (i, j, 0)),  # x
                pl.BlockSpec((1, F), lambda i, j: (0, 0)),          # alpha
            ],
            out_specs=[
                pl.BlockSpec((bb, F), lambda i, j: (i, 0)),         # pooled
                pl.BlockSpec((bb, tt, F), lambda i, j: (i, j, 0)),  # sigmoid
            ],
            scratch_shapes=[pltpu.VMEM((bb, F), jnp.float32)] * 3,
        ),
        compiler_params=pltpu.CompilerParams(
            dimension_semantics=("parallel", "arbitrary"),
            vmem_limit_bytes=int(vmem_limit),
        ),
        cost_estimate=cost,
    )(x, alpha2d)

    return final_out, sigmoid_output


def autopool_ref(x, alpha):
    # Pure-JAX reference mirroring the torch forward exactly.
    sig = jax.nn.sigmoid(x)
    a = sig * alpha
    m = jnp.max(a, axis=1, keepdims=True)
    num = jnp.exp(a - m)
    den = jnp.sum(num, axis=1, keepdims=True)
    w = num / den
    return jnp.sum(sig * w, axis=1), sig


if __name__ == "__main__":
    key = jax.random.PRNGKey(0)

    # 1) Module-sized shape (batch, seq, input_size); torch init: alpha = ones.
    B, T, F = 2, 8, 32
    x = jax.random.normal(key, (B, T, F), dtype=jnp.float32)
    alpha = jnp.ones((F,), dtype=jnp.float32)
    out, sig = autopool(x, alpha)
    jax.block_until_ready((out, sig))
    ref_out, ref_sig = autopool_ref(x, alpha)
    assert out.shape == (B, F) and sig.shape == (B, T, F)
    assert jnp.allclose(out, ref_out, atol=1e-5, rtol=1e-5)
    assert jnp.allclose(sig, ref_sig, atol=1e-5, rtol=1e-5)

    # 2) Unaligned B / F: partial batch block + masked lane stores, no padding.
    B2, T2, F2 = 5, 12, 40
    x2 = jax.random.normal(jax.random.PRNGKey(0), (B2, T2, F2), dtype=jnp.float32)
    alpha2 = jnp.ones((F2,), dtype=jnp.float32)
    out2, sig2 = autopool(x2, alpha2)
    jax.block_until_ready((out2, sig2))
    ref_out2, ref_sig2 = autopool_ref(x2, alpha2)
    assert out2.shape == (B2, F2) and sig2.shape == (B2, T2, F2)
    assert jnp.allclose(out2, ref_out2, atol=1e-5, rtol=1e-5)
    assert jnp.allclose(sig2, ref_sig2, atol=1e-5, rtol=1e-5)

    # 3) Force the chunked online-softmax path (partial last T-chunk is masked)
    #    with a non-trivial learned alpha.
    B3, T3, F3 = 3, 20, 33
    x3 = jax.random.normal(jax.random.PRNGKey(0), (B3, T3, F3), dtype=jnp.float32)
    alpha3 = 1.0 + 0.25 * jnp.sin(jnp.arange(F3, dtype=jnp.float32))
    out3, sig3 = autopool(x3, alpha3, block_t=8)
    jax.block_until_ready((out3, sig3))
    ref_out3, ref_sig3 = autopool_ref(x3, alpha3)
    assert jnp.allclose(out3, ref_out3, atol=1e-5, rtol=1e-5)
    assert jnp.allclose(sig3, ref_sig3, atol=1e-5, rtol=1e-5)

    print("KERNEL_OK")
</pallas_src>

<mosaic_0001>
module attributes {stable_mosaic.version = 11 : i64} {
  func.func @autopool_kernel(%arg0: i32, %arg1: i32, %arg2: memref<8x8x32xf32, #tpu.memory_space<vmem>>, %arg3: memref<1x32xf32, #tpu.memory_space<vmem>>, %arg4: memref<8x32xf32, #tpu.memory_space<vmem>>, %arg5: memref<8x8x32xf32, #tpu.memory_space<vmem>>, %arg6: memref<8x32xf32, #tpu.memory_space<vmem>>, %arg7: memref<8x32xf32, #tpu.memory_space<vmem>>, %arg8: memref<8x32xf32, #tpu.memory_space<vmem>>) attributes {dimension_semantics = [#tpu.dimension_semantics<parallel>, #tpu.dimension_semantics<arbitrary>], iteration_bounds = array<i64: 1, 1>, scalar_prefetch = 0 : i64, scratch_operands = 3 : i64, tpu.core_type = #tpu.core_type<tc>, window_params = [{transform_indices = @transform_0, window_bounds = array<i64: 8, 8, 32>}, {pipeline_mode = #tpu.pipeline_mode<synchronous>, transform_indices = @transform_1, window_bounds = array<i64: 1, 32>}, {transform_indices = @transform_2, window_bounds = array<i64: 8, 32>}, {transform_indices = @transform_3, window_bounds = array<i64: 8, 8, 32>}]} {
    %c0_i32 = arith.constant 0 : i32
    %0 = arith.cmpi eq, %arg1, %c0_i32 : i32
    %1 = arith.extui %0 : i1 to i32
    %c0_i32_0 = arith.constant 0 : i32
    %2 = arith.cmpi ne, %1, %c0_i32_0 : i32
    scf.if %2 {
      %cst_27 = arith.constant 0xFF800000 : f32
      %40 = vector.broadcast %cst_27 : f32 to vector<8x32xf32>
      %c0_28 = arith.constant 0 : index
      %c0_29 = arith.constant 0 : index
      %41 = vector.load %arg6[%c0_28, %c0_29] : memref<8x32xf32, #tpu.memory_space<vmem>>, vector<8x32xf32>
      tpu.vector_store %arg6[%c0_28, %c0_29], %40 {strides = array<i32>} : memref<8x32xf32, #tpu.memory_space<vmem>>, vector<8x32xf32>,
      %cst_30 = arith.constant 0.000000e+00 : f32
      %42 = vector.broadcast %cst_30 : f32 to vector<8x32xf32>
      %c0_31 = arith.constant 0 : index
      %c0_32 = arith.constant 0 : index
      %43 = vector.load %arg7[%c0_31, %c0_32] : memref<8x32xf32, #tpu.memory_space<vmem>>, vector<8x32xf32>
      tpu.vector_store %arg7[%c0_31, %c0_32], %42 {strides = array<i32>} : memref<8x32xf32, #tpu.memory_space<vmem>>, vector<8x32xf32>,
      %cst_33 = arith.constant 0.000000e+00 : f32
      %44 = vector.broadcast %cst_33 : f32 to vector<8x32xf32>
      %c0_34 = arith.constant 0 : index
      %c0_35 = arith.constant 0 : index
      %45 = vector.load %arg8[%c0_34, %c0_35] : memref<8x32xf32, #tpu.memory_space<vmem>>, vector<8x32xf32>
      tpu.vector_store %arg8[%c0_34, %c0_35], %44 {strides = array<i32>} : memref<8x32xf32, #tpu.memory_space<vmem>>, vector<8x32xf32>,
    } else {
    }
    %c0 = arith.constant 0 : index
    %c0_1 = arith.constant 0 : index
    %c0_2 = arith.constant 0 : index
    %3 = vector.load %arg2[%c0, %c0_1, %c0_2] : memref<8x8x32xf32, #tpu.memory_space<vmem>>, vector<8x8x32xf32>
    %c0_3 = arith.constant 0 : index
    %c0_4 = arith.constant 0 : index
    %4 = vector.load %arg3[%c0_3, %c0_4] : memref<1x32xf32, #tpu.memory_space<vmem>>, vector<1x32xf32>
    %cst = arith.constant 5.000000e-01 : f32
    %5 = vector.broadcast %cst : f32 to vector<8x8x32xf32>
    %6 = arith.mulf %5, %3 : vector<8x8x32xf32>
    %7 = math.tanh %6 : vector<8x8x32xf32>
    %cst_5 = arith.constant 1.000000e+00 : f32
    %8 = vector.broadcast %cst_5 : f32 to vector<8x8x32xf32>
    %9 = arith.addf %7, %8 : vector<8x8x32xf32>
    %cst_6 = arith.constant 5.000000e-01 : f32
    %10 = vector.broadcast %cst_6 : f32 to vector<8x8x32xf32>
    %11 = arith.mulf %10, %9 : vector<8x8x32xf32>
    %c0_7 = arith.constant 0 : index
    %c0_8 = arith.constant 0 : index
    %c0_9 = arith.constant 0 : index
    %12 = vector.load %arg5[%c0_7, %c0_8, %c0_9] : memref<8x8x32xf32, #tpu.memory_space<vmem>>, vector<8x8x32xf32>
    tpu.vector_store %arg5[%c0_7, %c0_8, %c0_9], %11 {strides = array<i32>} : memref<8x8x32xf32, #tpu.memory_space<vmem>>, vector<8x8x32xf32>,
    %13 = vector.shape_cast %4 : vector<1x32xf32> to vector<1x1x32xf32>
    %14 = vector.broadcast %13 : vector<1x1x32xf32> to vector<8x8x32xf32>
    %15 = arith.mulf %11, %14 : vector<8x8x32xf32>
    %c0_10 = arith.constant 0 : index
    %c0_11 = arith.constant 0 : index
    %16 = vector.load %arg6[%c0_10, %c0_11] : memref<8x32xf32, #tpu.memory_space<vmem>>, vector<8x32xf32>
    %cst_12 = arith.constant dense<0xFF800000> : vector<8x32xf32>
    %17 = vector.multi_reduction <maximumf>, %15, %cst_12 [1] : vector<8x8x32xf32> to vector<8x32xf32>
    %18 = arith.maximumf %16, %17 : vector<8x32xf32>
    %19 = arith.subf %16, %18 : vector<8x32xf32>
    %20 = math.exp %19 : vector<8x32xf32>
    %21 = vector.shape_cast %18 : vector<8x32xf32> to vector<8x1x32xf32>
    %22 = vector.broadcast %21 : vector<8x1x32xf32> to vector<8x8x32xf32>
    %23 = arith.subf %15, %22 : vector<8x8x32xf32>
    %24 = math.exp %23 : vector<8x8x32xf32>
    %c0_13 = arith.constant 0 : index
    %c0_14 = arith.constant 0 : index
    %25 = vector.load %arg7[%c0_13, %c0_14] : memref<8x32xf32, #tpu.memory_space<vmem>>, vector<8x32xf32>
    %26 = arith.mulf %20, %25 : vector<8x32xf32>
    %cst_15 = arith.constant dense<0.000000e+00> : vector<8x32xf32>
    %27 = vector.multi_reduction <add>, %24, %cst_15 [1] : vector<8x8x32xf32> to vector<8x32xf32>
    %28 = arith.addf %26, %27 : vector<8x32xf32>
    %c0_16 = arith.constant 0 : index
    %c0_17 = arith.constant 0 : index
    %29 = vector.load %arg7[%c0_16, %c0_17] : memref<8x32xf32, #tpu.memory_space<vmem>>, vector<8x32xf32>
    tpu.vector_store %arg7[%c0_16, %c0_17], %28 {strides = array<i32>} : memref<8x32xf32, #tpu.memory_space<vmem>>, vector<8x32xf32>,
    %c0_18 = arith.constant 0 : index
    %c0_19 = arith.constant 0 : index
    %30 = vector.load %arg8[%c0_18, %c0_19] : memref<8x32xf32, #tpu.memory_space<vmem>>, vector<8x32xf32>
    %31 = arith.mulf %20, %30 : vector<8x32xf32>
    %32 = arith.mulf %11, %24 : vector<8x8x32xf32>
    %cst_20 = arith.constant dense<0.000000e+00> : vector<8x32xf32>
    %33 = vector.multi_reduction <add>, %32, %cst_20 [1] : vector<8x8x32xf32> to vector<8x32xf32>
    %34 = arith.addf %31, %33 : vector<8x32xf32>
    %c0_21 = arith.constant 0 : index
    %c0_22 = arith.constant 0 : index
    %35 = vector.load %arg8[%c0_21, %c0_22] : memref<8x32xf32, #tpu.memory_space<vmem>>, vector<8x32xf32>
    tpu.vector_store %arg8[%c0_21, %c0_22], %34 {strides = array<i32>} : memref<8x32xf32, #tpu.memory_space<vmem>>, vector<8x32xf32>,
    %c0_23 = arith.constant 0 : index
    %c0_24 = arith.constant 0 : index
    %36 = vector.load %arg6[%c0_23, %c0_24] : memref<8x32xf32, #tpu.memory_space<vmem>>, vector<8x32xf32>
    tpu.vector_store %arg6[%c0_23, %c0_24], %18 {strides = array<i32>} : memref<8x32xf32, #tpu.memory_space<vmem>>, vector<8x32xf32>,
    %c0_i32_25 = arith.constant 0 : i32
    %37 = arith.cmpi eq, %arg1, %c0_i32_25 : i32
    %38 = arith.extui %37 : i1 to i32
    %c0_i32_26 = arith.constant 0 : i32
    %39 = arith.cmpi ne, %38, %c0_i32_26 : i32
    scf.if %39 {
      %c0_27 = arith.constant 0 : index
      %c0_28 = arith.constant 0 : index
      %40 = vector.load %arg8[%c0_27, %c0_28] : memref<8x32xf32, #tpu.memory_space<vmem>>, vector<8x32xf32>
      %c0_29 = arith.constant 0 : index
      %c0_30 = arith.constant 0 : index
      %41 = vector.load %arg7[%c0_29, %c0_30] : memref<8x32xf32, #tpu.memory_space<vmem>>, vector<8x32xf32>
      %42 = arith.divf %40, %41 : vector<8x32xf32>
      %c0_31 = arith.constant 0 : index
      %c0_32 = arith.constant 0 : index
      %43 = vector.load %arg4[%c0_31, %c0_32] : memref<8x32xf32, #tpu.memory_space<vmem>>, vector<8x32xf32>
      tpu.vector_store %arg4[%c0_31, %c0_32], %42 {strides = array<i32>} : memref<8x32xf32, #tpu.memory_space<vmem>>, vector<8x32xf32>,
    } else {
    }
    return
  }
  func.func @transform_0(%arg0: i32, %arg1: i32) -> (i32, i32, i32) {
    %c0_i32 = arith.constant 0 : i32
    %c0_i32_0 = arith.constant 0 : i32
    return %arg0, %arg1, %c0_i32 : i32, i32, i32
  }
  func.func @transform_1(%arg0: i32, %arg1: i32) -> (i32, i32) {
    %c0_i32 = arith.constant 0 : i32
    %c0_i32_0 = arith.constant 0 : i32
    %c0_i32_1 = arith.constant 0 : i32
    return %c0_i32, %c0_i32_0 : i32, i32
  }
  func.func @transform_2(%arg0: i32, %arg1: i32) -> (i32, i32) {
    %c0_i32 = arith.constant 0 : i32
    %c0_i32_0 = arith.constant 0 : i32
    return %arg0, %c0_i32 : i32, i32
  }
  func.func @transform_3(%arg0: i32, %arg1: i32) -> (i32, i32, i32) {
    %c0_i32 = arith.constant 0 : i32
    %c0_i32_0 = arith.constant 0 : i32
    return %arg0, %arg1, %c0_i32 : i32, i32, i32
  }
}

</mosaic_0001>

<llo_original>
// kernel: tpu_custom_call.1
$region0: #{tpu_custom_call.1}
  #allocation0 [shape = 'u32[]', space=smem, size = 0x4, offset = 0x4, fixed_abs, tag = 'smem constant byte address 0x4 - core index']
  #allocation1 [shape = 'u32[144,128]{1,0:T(1,128)}', space=vmem, size = 0x12000, scoped, tag = 'internal scratch']
  #allocation2 [shape = 'f32[8,32]{1,0:T(8,128)}', space=vmem, size = 0x1000, scoped, tag = 'scratch operand']
  #allocation3 [shape = 'f32[8,32]{1,0:T(8,128)}', space=vmem, size = 0x1000, scoped, tag = 'scratch operand']
  #allocation4 [shape = 'f32[8,32]{1,0:T(8,128)}', space=vmem, size = 0x1000, scoped, tag = 'scratch operand']
  %s0 = inlined_call_operand.hbm [shape: f32[2,8,32], index: 0, kind: input, shape index: {}]
  %s1 = inlined_call_operand.vmem [shape: f32[1,32], index: 1, kind: input, shape index: {}]
  %s2 = inlined_call_operand.hbm [shape: f32[2,32], index: 2, kind: output, shape index: {0}]
  %s3 = inlined_call_operand.hbm [shape: f32[2,8,32], index: 3, kind: output, shape index: {1}]
  %4 = xla_tuple %s2, %s3
  %s5 = sld [smem:[#allocation0]]
  $region38: #{tpu_custom_call.1} parent=0
    _
  %s7 = ssub.s32 1, %s5
  %s8 = scalar_select 0, %s7, %s5
  $region1: #{tpu_custom_call.1} parent=0
    #allocation5 [shape = 'u8[32768]{0}', space=vmem, size = 0x8000, scoped, tag = 'input window, operand 0, single buffered']
    #allocation6 [shape = 's32[1]{0}', space=sflag, size = 0x4, scoped, tag = 'scoped memory for tpu_custom_call.1']
    #allocation7 [shape = 's32[1]{0}', space=sflag, size = 0x4, scoped, tag = 'scoped memory for tpu_custom_call.1']
    #allocation8 [shape = 'u8[4096]{0}', space=vmem, size = 0x1000, scoped, tag = 'output window, operand 0, single buffered']
    #allocation9 [shape = 'u8[32768]{0}', space=vmem, size = 0x8000, scoped, tag = 'output window, operand 1, single buffered']
    #allocation10 [shape = 's32[1]{0}', space=sflag, size = 0x4, scoped, tag = 'scoped memory for tpu_custom_call.1']
    %9 = vsyncpa [#allocation6], 0
    %10 = vsyncpa [#allocation7], 0
    %11 = vsyncpa [#allocation10], 0
    // Predicated region
    $region2: #{tpu_custom_call.1} parent=1 // pred_check
      _
    $region3: #{tpu_custom_call.1} parent=1 // pred_check_branch
      %13 = sbr.rel (0) target = $region5
    $region4: #{tpu_custom_call.1} parent=1 // pred_region
      %s15 = ssub.s32 1024, 256
      %16 = vsyncadd [#allocation6], %s15
      %s17 = sshll.u32 [#allocation5], 4
      %s18 = int_to_ptr.vmem [resolvable:$true] %s17
      %23 = dma.hbm_to_vmem [thread:$0]  %s0, 256, %s18, [#allocation6], 128, 128, 8
    $region5: #{tpu_custom_call.1} parent=1 // pred_fallthru
      _
    // Predicated region
    $region6: #{tpu_custom_call.1} parent=1 // pred_check
      _
    $region7: #{tpu_custom_call.1} parent=1 // pred_check_branch
      %25 = sbr.rel (0) target = $region9
    $region8: #{tpu_custom_call.1} parent=1 // pred_region
      _
    $region9: #{tpu_custom_call.1} parent=1 // pred_fallthru
      _
    // Predicated region
    $region10: #{tpu_custom_call.1} parent=1 // pred_check
      _
    $region11: #{tpu_custom_call.1} parent=1 // pred_check_branch
      %27 = sbr.rel (0) target = $region13
    $region12: #{tpu_custom_call.1} parent=1 // pred_region
      %28 = dma.done [#allocation6], 1024
    $region13: #{tpu_custom_call.1} parent=1 // pred_fallthru
      _
    %p29 = scmp.eq.s32.totalorder 0, 0
    // Predicated region
    $region14: #{tpu_custom_call.1} parent=1 // pred_check
      %p30 = pneg %p29
    $region15: #{tpu_custom_call.1} parent=1 // pred_check_branch
      %32 = sbr.rel (%p30) target = $region17
    $region16: #{tpu_custom_call.1} parent=1 // pred_region
      %vm33 = vcmask 261120
      %34 = vst.msk [vmem:[#allocation2] sm:$0xff] %vm33, -inf
      %35 = vst.msk [vmem:[#allocation3] sm:$0xff] %vm33, 0.0
      %36 = vst.msk [vmem:[#allocation4] sm:$0xff] %vm33, 0.0
    $region17: #{tpu_custom_call.1} parent=1 // pred_fallthru
      _
    %v37 = vld [vmem:[#allocation5] sm:$0xff]
    %v38 = vld [vmem:[#allocation5 + $0x8] sm:$0xff]
    %v39 = vld [vmem:[#allocation5 + $0x10] sm:$0xff]
    %v40 = vld [vmem:[#allocation5 + $0x18] sm:$0xff]
    %v41 = vld [vmem:[#allocation5 + $0x20] sm:$0xff]
    %v42 = vld [vmem:[#allocation5 + $0x28] sm:$0xff]
    %v43 = vld [vmem:[#allocation5 + $0x30] sm:$0xff]
    %v44 = vld [vmem:[#allocation5 + $0x38] sm:$0xff]
    %v45 = vld [vmem:[%s1] sm:$0x1]
    %v46 = vmul.f32 %v37, 0.5
    %v47 = vmul.f32 %v38, 0.5
    %v48 = vmul.f32 %v39, 0.5
    %v49 = vmul.f32 %v40, 0.5
    %v50 = vmul.f32 %v41, 0.5
    %v51 = vmul.f32 %v42, 0.5
    %v52 = vmul.f32 %v43, 0.5
    %v53 = vmul.f32 %v44, 0.5
    %v54 = vtanh.pop %v46
    %v55 = vtanh.pop %v47
    %v56 = vtanh.pop %v48
    %v57 = vtanh.pop %v49
    %v58 = vtanh.pop %v50
    %v59 = vtanh.pop %v51
    %v60 = vtanh.pop %v52
    %v61 = vtanh.pop %v53
    %v62 = vadd.f32 %v54, 1.0
    %v63 = vadd.f32 %v55, 1.0
    %v64 = vadd.f32 %v56, 1.0
    %v65 = vadd.f32 %v57, 1.0
    %v66 = vadd.f32 %v58, 1.0
    %v67 = vadd.f32 %v59, 1.0
    %v68 = vadd.f32 %v60, 1.0
    %v69 = vadd.f32 %v61, 1.0
    %v70 = vmul.f32 %v62, 0.5
    %v71 = vmul.f32 %v63, 0.5
    %v72 = vmul.f32 %v64, 0.5
    %v73 = vmul.f32 %v65, 0.5
    %v74 = vmul.f32 %v66, 0.5
    %v75 = vmul.f32 %v67, 0.5
    %v76 = vmul.f32 %v68, 0.5
    %v77 = vmul.f32 %v69, 0.5
    %vm78 = vcmask 261120
    %79 = vst.msk [vmem:[#allocation9] sm:$0xff] %vm78, %v70
    %80 = vst.msk [vmem:[#allocation9 + $0x8] sm:$0xff] %vm78, %v71
    %81 = vst.msk [vmem:[#allocation9 + $0x10] sm:$0xff] %vm78, %v72
    %82 = vst.msk [vmem:[#allocation9 + $0x18] sm:$0xff] %vm78, %v73
    %83 = vst.msk [vmem:[#allocation9 + $0x20] sm:$0xff] %vm78, %v74
    %84 = vst.msk [vmem:[#allocation9 + $0x28] sm:$0xff] %vm78, %v75
    %85 = vst.msk [vmem:[#allocation9 + $0x30] sm:$0xff] %vm78, %v76
    %86 = vst.msk [vmem:[#allocation9 + $0x38] sm:$0xff] %vm78, %v77
    %v88 = vlaneseq
    %v89 = vshrl.u32 %v88, 7
    %v90 = vsub.s32 0, %v89
    %v91 = vrot.slane %v45, %v90
    %v93 = vmul.f32 %v70, %v91
    %v94 = vmul.f32 %v71, %v91
    %v95 = vmul.f32 %v72, %v91
    %v96 = vmul.f32 %v73, %v91
    %v97 = vmul.f32 %v74, %v91
    %v98 = vmul.f32 %v75, %v91
    %v99 = vmul.f32 %v76, %v91
    %v100 = vmul.f32 %v77, %v91
    %v101 = vld [vmem:[#allocation2] sm:$0xff]
    %v102 = vsel %vm78, %v93, -inf
    %v103 = vrot.slane %v102, 4
    %v104 = vmax.f32 %v102, %v103
    %v105 = vrot.slane %v104, 2
    %v106 = vmax.f32 %v104, %v105
    %v107 = vrot.slane %v106, 1
    %v108 = vmax.f32 %v106, %v107
    %v109 = vsel %vm78, %v94, -inf
    %v110 = vrot.slane %v109, 4
    %v111 = vmax.f32 %v109, %v110
    %v112 = vrot.slane %v111, 2
    %v113 = vmax.f32 %v111, %v112
    %v114 = vrot.slane %v113, 1
    %v115 = vmax.f32 %v113, %v114
    %v116 = vsel %vm78, %v95, -inf
    %v117 = vrot.slane %v116, 4
    %v118 = vmax.f32 %v116, %v117
    %v119 = vrot.slane %v118, 2
    %v120 = vmax.f32 %v118, %v119
    %v121 = vrot.slane %v120, 1
    %v122 = vmax.f32 %v120, %v121
    %v123 = vsel %vm78, %v96, -inf
    %v124 = vrot.slane %v123, 4
    %v125 = vmax.f32 %v123, %v124
    %v126 = vrot.slane %v125, 2
    %v127 = vmax.f32 %v125, %v126
    %v128 = vrot.slane %v127, 1
    %v129 = vmax.f32 %v127, %v128
    %v130 = vsel %vm78, %v97, -inf
    %v131 = vrot.slane %v130, 4
    %v132 = vmax.f32 %v130, %v131
    %v133 = vrot.slane %v132, 2
    %v134 = vmax.f32 %v132, %v133
    %v135 = vrot.slane %v134, 1
    %v136 = vmax.f32 %v134, %v135
    %v137 = vsel %vm78, %v98, -inf
    %v138 = vrot.slane %v137, 4
    %v139 = vmax.f32 %v137, %v138
    %v140 = vrot.slane %v139, 2
    %v141 = vmax.f32 %v139, %v140
    %v142 = vrot.slane %v141, 1
    %v143 = vmax.f32 %v141, %v142
    %v144 = vsel %vm78, %v99, -inf
    %v145 = vrot.slane %v144, 4
    %v146 = vmax.f32 %v144, %v145
    %v147 = vrot.slane %v146, 2
    %v148 = vmax.f32 %v146, %v147
    %v149 = vrot.slane %v148, 1
    %v150 = vmax.f32 %v148, %v149
    %v151 = vsel %vm78, %v100, -inf
    %v152 = vrot.slane %v151, 4
    %v153 = vmax.f32 %v151, %v152
    %v154 = vrot.slane %v153, 2
    %v155 = vmax.f32 %v153, %v154
    %v156 = vrot.slane %v155, 1
    %v157 = vmax.f32 %v155, %v156
    %vm166 = vcmask 1041409
    %v167 = vsel %vm166, %v115, %v108
    %vm168 = vcmask 1042434
    %v169 = vsel %vm168, %v122, %v167
    %vm170 = vcmask 1043459
    %v171 = vsel %vm170, %v129, %v169
    %vm172 = vcmask 1044484
    %v173 = vsel %vm172, %v136, %v171
    %vm174 = vcmask 1045509
    %v175 = vsel %vm174, %v143, %v173
    %vm176 = vcmask 1046534
    %v177 = vsel %vm176, %v150, %v175
    %vm178 = vcmask 1047559
    %v179 = vsel %vm178, %v157, %v177
    %v181 = vmax.f32 %v101, %v179
    %v182 = vsub.f32 %v101, %v181
    %v183 = vmul.f32 %v182, 1.442695
    %v184 = vpow.pop %v183
    %v186 = vcombine.high %v181, %v181
    %v188 = vunpack.c.l.s4 1966171168
    %v189 = vunpack.c.0.s8 %v188
    %v190 = vlaneseq
    %v191 = vshrl.u32 %v190, 7
    %v192 = vsub.s32 %v189, %v191
    %v193 = vrot.slane %v181, %v192
    %v195 = vunpack.c.l.s4 1966171168
    %v196 = vunpack.c.0.s8 %v195
    %v197 = vlaneseq
    %v198 = vshrl.u32 %v197, 7
    %v199 = vsub.s32 %v196, %v198
    %v200 = vrot.slane %v186, %v199
    %v201 = vcombine.high %v193, %v193
    %v202 = vcombine.high %v200, %v200
    %v204 = vunpack.c.l.s4 1966171168
    %v205 = vunpack.c.0.s8 %v204
    %v206 = vlaneseq
    %v207 = vshrl.u32 %v206, 7
    %v208 = vsub.s32 %v205, %v207
    %v209 = vrot.slane %v193, %v208
    %v211 = vunpack.c.l.s4 1966171168
    %v212 = vunpack.c.0.s8 %v211
    %v213 = vlaneseq
    %v214 = vshrl.u32 %v213, 7
    %v215 = vsub.s32 %v212, %v214
    %v216 = vrot.slane %v200, %v215
    %v218 = vunpack.c.l.s4 1966171168
    %v219 = vunpack.c.0.s8 %v218
    %v220 = vlaneseq
    %v221 = vshrl.u32 %v220, 7
    %v222 = vsub.s32 %v219, %v221
    %v223 = vrot.slane %v201, %v222
    %v225 = vunpack.c.l.s4 1966171168
    %v226 = vunpack.c.0.s8 %v225
    %v227 = vlaneseq
    %v228 = vshrl.u32 %v227, 7
    %v229 = vsub.s32 %v226, %v228
    %v230 = vrot.slane %v202, %v229
    %v231 = vcombine.high %v209, %v209
    %v232 = vcombine.high %v216, %v216
    %v233 = vcombine.high %v223, %v223
    %v234 = vcombine.high %v230, %v230
    %v235 = vlaneseq
    %v236 = vshrl.u32 %v235, 7
    %v237 = vsub.s32 0, %v236
    %v238 = vrot.slane %v209, %v237
    %v239 = vlaneseq
    %v240 = vshrl.u32 %v239, 7
    %v241 = vsub.s32 0, %v240
    %v242 = vrot.slane %v223, %v241
    %v243 = vlaneseq
    %v244 = vshrl.u32 %v243, 7
    %v245 = vsub.s32 0, %v244
    %v246 = vrot.slane %v231, %v245
    %v247 = vlaneseq
    %v248 = vshrl.u32 %v247, 7
    %v249 = vsub.s32 0, %v248
    %v250 = vrot.slane %v233, %v249
    %v251 = vlaneseq
    %v252 = vshrl.u32 %v251, 7
    %v253 = vsub.s32 0, %v252
    %v254 = vrot.slane %v216, %v253
    %v255 = vlaneseq
    %v256 = vshrl.u32 %v255, 7
    %v257 = vsub.s32 0, %v256
    %v258 = vrot.slane %v230, %v257
    %v259 = vlaneseq
    %v260 = vshrl.u32 %v259, 7
    %v261 = vsub.s32 0, %v260
    %v262 = vrot.slane %v232, %v261
    %v263 = vlaneseq
    %v264 = vshrl.u32 %v263, 7
    %v265 = vsub.s32 0, %v264
    %v266 = vrot.slane %v234, %v265
    %v275 = vsub.f32 %v93, %v238
    %v276 = vsub.f32 %v94, %v242
    %v277 = vsub.f32 %v95, %v246
    %v278 = vsub.f32 %v96, %v250
    %v279 = vsub.f32 %v97, %v254
    %v280 = vsub.f32 %v98, %v258
    %v281 = vsub.f32 %v99, %v262
    %v282 = vsub.f32 %v100, %v266
    %v283 = vmul.f32 %v275, 1.442695
    %v284 = vpow.pop %v283
    %v285 = vmul.f32 %v276, 1.442695
    %v286 = vpow.pop %v285
    %v287 = vmul.f32 %v277, 1.442695
    %v288 = vpow.pop %v287
    %v289 = vmul.f32 %v278, 1.442695
    %v290 = vpow.pop %v289
    %v291 = vmul.f32 %v279, 1.442695
    %v292 = vpow.pop %v291
    %v293 = vmul.f32 %v280, 1.442695
    %v294 = vpow.pop %v293
    %v295 = vmul.f32 %v281, 1.442695
    %v296 = vpow.pop %v295
    %v297 = vmul.f32 %v282, 1.442695
    %v298 = vpow.pop %v297
    %v299 = vld [vmem:[#allocation3] sm:$0xff]
    %v300 = vmul.f32 %v184, %v299
    %v301 = vsel %vm78, %v284, 0.0
    %v302 = vrot.slane %v301, 4
    %v303 = vadd.f32 %v301, %v302
    %v304 = vrot.slane %v303, 2
    %v305 = vadd.f32 %v303, %v304
    %v306 = vrot.slane %v305, 1
    %v307 = vadd.f32 %v305, %v306
    %v308 = vsel %vm78, %v286, 0.0
    %v309 = vrot.slane %v308, 4
    %v310 = vadd.f32 %v308, %v309
    %v311 = vrot.slane %v310, 2
    %v312 = vadd.f32 %v310, %v311
    %v313 = vrot.slane %v312, 1
    %v314 = vadd.f32 %v312, %v313
    %v315 = vsel %vm78, %v288, 0.0
    %v316 = vrot.slane %v315, 4
    %v317 = vadd.f32 %v315, %v316
    %v318 = vrot.slane %v317, 2
    %v319 = vadd.f32 %v317, %v318
    %v320 = vrot.slane %v319, 1
    %v321 = vadd.f32 %v319, %v320
    %v322 = vsel %vm78, %v290, 0.0
    %v323 = vrot.slane %v322, 4
    %v324 = vadd.f32 %v322, %v323
    %v325 = vrot.slane %v324, 2
    %v326 = vadd.f32 %v324, %v325
    %v327 = vrot.slane %v326, 1
    %v328 = vadd.f32 %v326, %v327
    %v329 = vsel %vm78, %v292, 0.0
    %v330 = vrot.slane %v329, 4
    %v331 = vadd.f32 %v329, %v330
    %v332 = vrot.slane %v331, 2
    %v333 = vadd.f32 %v331, %v332
    %v334 = vrot.slane %v333, 1
    %v335 = vadd.f32 %v333, %v334
    %v336 = vsel %vm78, %v294, 0.0
    %v337 = vrot.slane %v336, 4
    %v338 = vadd.f32 %v336, %v337
    %v339 = vrot.slane %v338, 2
    %v340 = vadd.f32 %v338, %v339
    %v341 = vrot.slane %v340, 1
    %v342 = vadd.f32 %v340, %v341
    %v343 = vsel %vm78, %v296, 0.0
    %v344 = vrot.slane %v343, 4
    %v345 = vadd.f32 %v343, %v344
    %v346 = vrot.slane %v345, 2
    %v347 = vadd.f32 %v345, %v346
    %v348 = vrot.slane %v347, 1
    %v349 = vadd.f32 %v347, %v348
    %v350 = vsel %vm78, %v298, 0.0
    %v351 = vrot.slane %v350, 4
    %v352 = vadd.f32 %v350, %v351
    %v353 = vrot.slane %v352, 2
    %v354 = vadd.f32 %v352, %v353
    %v355 = vrot.slane %v354, 1
    %v356 = vadd.f32 %v354, %v355
    %v365 = vsel %vm166, %v314, %v307
    %v366 = vsel %vm168, %v321, %v365
    %v367 = vsel %vm170, %v328, %v366
    %v368 = vsel %vm172, %v335, %v367
    %v369 = vsel %vm174, %v342, %v368
    %v370 = vsel %vm176, %v349, %v369
    %v371 = vsel %vm178, %v356, %v370
    %v373 = vadd.f32 %v300, %v371
    %374 = vst.msk [vmem:[#allocation3] sm:$0xff] %vm78, %v373
    %v375 = vld [vmem:[#allocation4] sm:$0xff]
    %v376 = vmul.f32 %v184, %v375
    %v377 = vmul.f32 %v70, %v284
    %v378 = vmul.f32 %v71, %v286
    %v379 = vmul.f32 %v72, %v288
    %v380 = vmul.f32 %v73, %v290
    %v381 = vmul.f32 %v74, %v292
    %v382 = vmul.f32 %v75, %v294
    %v383 = vmul.f32 %v76, %v296
    %v384 = vmul.f32 %v77, %v298
    %v385 = vsel %vm78, %v377, 0.0
    %v386 = vrot.slane %v385, 4
    %v387 = vadd.f32 %v385, %v386
    %v388 = vrot.slane %v387, 2
    %v389 = vadd.f32 %v387, %v388
    %v390 = vrot.slane %v389, 1
    %v391 = vadd.f32 %v389, %v390
    %v392 = vsel %vm78, %v378, 0.0
    %v393 = vrot.slane %v392, 4
    %v394 = vadd.f32 %v392, %v393
    %v395 = vrot.slane %v394, 2
    %v396 = vadd.f32 %v394, %v395
    %v397 = vrot.slane %v396, 1
    %v398 = vadd.f32 %v396, %v397
    %v399 = vsel %vm78, %v379, 0.0
    %v400 = vrot.slane %v399, 4
    %v401 = vadd.f32 %v399, %v400
    %v402 = vrot.slane %v401, 2
    %v403 = vadd.f32 %v401, %v402
    %v404 = vrot.slane %v403, 1
    %v405 = vadd.f32 %v403, %v404
    %v406 = vsel %vm78, %v380, 0.0
    %v407 = vrot.slane %v406, 4
    %v408 = vadd.f32 %v406, %v407
    %v409 = vrot.slane %v408, 2
    %v410 = vadd.f32 %v408, %v409
    %v411 = vrot.slane %v410, 1
    %v412 = vadd.f32 %v410, %v411
    %v413 = vsel %vm78, %v381, 0.0
    %v414 = vrot.slane %v413, 4
    %v415 = vadd.f32 %v413, %v414
    %v416 = vrot.slane %v415, 2
    %v417 = vadd.f32 %v415, %v416
    %v418 = vrot.slane %v417, 1
    %v419 = vadd.f32 %v417, %v418
    %v420 = vsel %vm78, %v382, 0.0
    %v421 = vrot.slane %v420, 4
    %v422 = vadd.f32 %v420, %v421
    %v423 = vrot.slane %v422, 2
    %v424 = vadd.f32 %v422, %v423
    %v425 = vrot.slane %v424, 1
    %v426 = vadd.f32 %v424, %v425
    %v427 = vsel %vm78, %v383, 0.0
    %v428 = vrot.slane %v427, 4
    %v429 = vadd.f32 %v427, %v428
    %v430 = vrot.slane %v429, 2
    %v431 = vadd.f32 %v429, %v430
    %v432 = vrot.slane %v431, 1
    %v433 = vadd.f32 %v431, %v432
    %v434 = vsel %vm78, %v384, 0.0
    %v435 = vrot.slane %v434, 4
    %v436 = vadd.f32 %v434, %v435
    %v437 = vrot.slane %v436, 2
    %v438 = vadd.f32 %v436, %v437
    %v439 = vrot.slane %v438, 1
    %v440 = vadd.f32 %v438, %v439
    %v449 = vsel %vm166, %v398, %v391
    %v450 = vsel %vm168, %v405, %v449
    %v451 = vsel %vm170, %v412, %v450
    %v452 = vsel %vm172, %v419, %v451
    %v453 = vsel %vm174, %v426, %v452
    %v454 = vsel %vm176, %v433, %v453
    %v455 = vsel %vm178, %v440, %v454
    %v457 = vadd.f32 %v376, %v455
    %458 = vst.msk [vmem:[#allocation4] sm:$0xff] %vm78, %v457
    %459 = vst.msk [vmem:[#allocation2] sm:$0xff] %vm78, %v181
    // Predicated region
    $region18: #{tpu_custom_call.1} parent=1 // pred_check
      %p460 = pneg %p29
    $region19: #{tpu_custom_call.1} parent=1 // pred_check_branch
      %462 = sbr.rel (%p460) target = $region21
    $region20: #{tpu_custom_call.1} parent=1 // pred_region
      %v463 = vld [vmem:[#allocation4] sm:$0xff]
      %v464 = vld [vmem:[#allocation3] sm:$0xff]
      %v465 = vrcp.pop %v464
      %v466 = vmul.f32 %v463, %v465
      %467 = vst.msk [vmem:[#allocation8] sm:$0xff] %vm78, %v466
    $region21: #{tpu_custom_call.1} parent=1 // pred_fallthru
      _
    // Predicated region
    $region22: #{tpu_custom_call.1} parent=1 // pred_check
      _
    $region23: #{tpu_custom_call.1} parent=1 // pred_check_branch
      %469 = sbr.rel (0) target = $region25
    $region24: #{tpu_custom_call.1} parent=1 // pred_region
      %s471 = ssub.s32 128, 32
      %472 = vsyncadd [#allocation7], %s471
      %s473 = sshll.u32 [#allocation8], 4
      %s474 = int_to_ptr.vmem [resolvable:$true] %s473
      %479 = dma.vmem_to_hbm [thread:$0]  %s474, 32, %s2, [#allocation7], 32, 32, 2
    $region25: #{tpu_custom_call.1} parent=1 // pred_fallthru
      _
    // Predicated region
    $region26: #{tpu_custom_call.1} parent=1 // pred_check
      _
    $region27: #{tpu_custom_call.1} parent=1 // pred_check_branch
      %481 = sbr.rel (0) target = $region29
    $region28: #{tpu_custom_call.1} parent=1 // pred_region
      %s483 = ssub.s32 1024, 256
      %484 = vsyncadd [#allocation10], %s483
      %s485 = sshll.u32 [#allocation9], 4
      %s486 = int_to_ptr.vmem [resolvable:$true] %s485
      %491 = dma.vmem_to_hbm [thread:$0]  %s486, 256, %s3, [#allocation10], 128, 128, 8
    $region29: #{tpu_custom_call.1} parent=1 // pred_fallthru
      _
    // Predicated region
    $region30: #{tpu_custom_call.1} parent=1 // pred_check
      _
    $region31: #{tpu_custom_call.1} parent=1 // pred_check_branch
      %493 = sbr.rel (0) target = $region33
    $region32: #{tpu_custom_call.1} parent=1 // pred_region
      %494 = dma.done [#allocation7], 128
    $region33: #{tpu_custom_call.1} parent=1 // pred_fallthru
      _
    // Predicated region
    $region34: #{tpu_custom_call.1} parent=1 // pred_check
      _
    $region35: #{tpu_custom_call.1} parent=1 // pred_check_branch
      %496 = sbr.rel (0) target = $region37
    $region36: #{tpu_custom_call.1} parent=1 // pred_region
      %497 = dma.done [#allocation10], 1024
    $region37: #{tpu_custom_call.1} parent=1 // pred_fallthru
      _
    %498 = vsyncpa [#allocation6], 1
    %499 = vsyncpa [#allocation7], 1
    %500 = vsyncpa [#allocation10], 1

</llo_original>
